<compile_context>
chip_gen: v7x
topology: tpu7x:2x2x1
jax: 0.10.0
libtpu: 0.0.40
codegen_flags: <defaults>
</compile_context>

<pallas_src>
import functools

import jax
import jax.numpy as jnp
from jax.experimental import pallas as pl
from jax.experimental.pallas import tpu as pltpu


# ----------------------------------------------------------------------------- utils
def _pick_row_tile(nrows, row_bytes, target_bytes=1 << 20):
    """Rows per block: multiple of 8 (or all rows when fewer than 8), ~1 MiB input
    blocks, and >=2 grid steps when the problem is big enough (pipelining + v7x
    dual TensorCore).  (in + out) * 2 pipeline buffers stays a few MiB, well under
    the 32 MiB scoped-VMEM default on all generations (incl. v7x's 64 MiB VMEM)."""
    if nrows <= 8:
        return nrows
    tile = max(8, min((target_bytes // max(row_bytes, 1)) // 8 * 8,
                      (nrows // 8) * 8))
    if nrows >= 16 and pl.cdiv(nrows, tile) < 2:
        tile = max(8, ((pl.cdiv(nrows, 2) + 7) // 8) * 8)
    return tile


# --------------------------------------------------------- fused 2x2 / stride-2 path
def _fused2x2_kernel(t_ref, x_ref, o_ref, *, w: int, g: int):
    """Fully fused T-Max-Avg pool for 2x2 windows, stride 2, no padding.

    x_ref: (tile_rows, 2*g*w).  Each kernel row packs g vertical row-pairs of the
           image: chunk c occupies lanes [2*c*w, 2*(c+1)*w); its first w lanes are
           image row 2*ho, the next w lanes image row 2*ho+1.
    o_ref: (tile_rows, g*w).  Pooled values with each value replicated over its
           horizontal pair; the wrapper takes every other lane afterwards.
    """
    T = t_ref[0]                                   # read SMEM scalar once per block
    x = x_ref[...].astype(jnp.float32)             # upcast in-kernel (bf16-friendly)
    R, L = x.shape                                 # L = 2*g*w

    def vswap(a):
        # Swap the two w-wide halves of every 2w chunk: every element is replaced
        # by its vertical-pair partner (contiguous lane slices only -> cheap).
        parts = []
        for c in range(g):
            lo = 2 * c * w
            parts.append(a[:, lo + w:lo + 2 * w])
            parts.append(a[:, lo:lo + w])
        return jnp.concatenate(parts, axis=1)

    col = jax.lax.broadcasted_iota(jnp.int32, (R, L), 1)
    is_even = (col & 1) == 0                       # even image column (w is even)

    def hswap(a):
        # Replace every element by its horizontal-pair partner (lane +-1).
        left = jnp.concatenate([a[:, 1:], a[:, :1]], axis=1)           # a[c + 1]
        right = jnp.concatenate([a[:, L - 1:], a[:, :L - 1]], axis=1)  # a[c - 1]
        return jnp.where(is_even, left, right)

    m4 = jnp.maximum(x, vswap(x))                  # vertical pair max
    m4 = jnp.maximum(m4, hswap(m4))                # full 2x2 max, replicated x4

    keep = x >= T * m4                             # no explicit mask tensor kept
    sel = jnp.where(keep, x, 0.0)
    cnt = keep.astype(jnp.float32)

    s4 = sel + vswap(sel)
    s4 = s4 + hswap(s4)                            # thresholded sum, replicated x4
    c4 = cnt + vswap(cnt)
    c4 = c4 + hswap(c4)                            # thresholded count, replicated x4

    inv = pl.reciprocal(c4 + 1e-6, approx=False)   # exact; approx would drift ~1e-4
    res = jnp.where(c4 > 0.0, s4 * inv, m4)        # pooled value, replicated x4

    # Keep the first image row of every pair -> (tile_rows, g*w).  Lanes stay
    # horizontally replicated; the stride-2 lane downsample runs in XLA on this
    # already 4x-smaller-than-x array.
    tops = [res[:, 2 * c * w:2 * c * w + w] for c in range(g)]
    y = tops[0] if g == 1 else jnp.concatenate(tops, axis=1)
    o_ref[...] = y.astype(o_ref.dtype)


def _tmaxavg_fused_2x2(x, t_arr):
    B, C, H, W = x.shape
    N = B * C
    Ho, Wo = H // 2, W // 2
    nrow_pairs = N * Ho                            # number of vertical row-pairs

    # Group g row-pairs per kernel row so the lane dim is ~128+ even for small W,
    # but keep >=2 row-tiles (pipelining / dual TC) when the problem is big enough.
    g = 1
    if 2 * W < 256:
        target = max(1, 256 // (2 * W))
        for cand in range(target, 0, -1):
            if nrow_pairs % cand == 0 and (nrow_pairs // cand >= 16 or cand == 1):
                g = cand
                break
    rows = nrow_pairs // g
    lanes_in = 2 * g * W
    lanes_out = g * W

    xg = x.reshape(rows, lanes_in)                 # free, contiguous reshape (no copy)

    tile = _pick_row_tile(rows, lanes_in * x.dtype.itemsize)
    grid = (pl.cdiv(rows, tile),)

    y = pl.pallas_call(
        functools.partial(_fused2x2_kernel, w=W, g=g),
        out_shape=jax.ShapeDtypeStruct((rows, lanes_out), x.dtype),
        grid_spec=pltpu.PrefetchScalarGridSpec(
            num_scalar_prefetch=0,
            grid=grid,
            in_specs=[
                pl.BlockSpec(memory_space=pltpu.SMEM),             # T (read once)
                pl.BlockSpec((tile, lanes_in), lambda i: (i, 0)),  # x row-pair tile
            ],
            out_specs=pl.BlockSpec((tile, lanes_out), lambda i: (i, 0)),
        ),
        compiler_params=pltpu.CompilerParams(
            dimension_semantics=("parallel",),
            vmem_limit_bytes=32 * 1024 * 1024),
    )(t_arr, xg)

    # (rows, g*W) == (N*Ho, W) with every pooled value duplicated over its
    # horizontal pair -> take every other column, then back to NCHW.
    out = y.reshape(N * Ho, W)[:, ::2]
    return out.reshape(B, C, Ho, Wo)


# ----------------------------------------------------- general (any config) fallback
def _unfold_patches(x, kernel_size, stride, padding):
    """F.unfold equivalent (zero padding). x: (B, C, H, W) -> (B, C, k, Ho, Wo)."""
    kh, kw = kernel_size
    sh, sw = stride
    ph, pw = padding
    x_pad = jnp.pad(x, ((0, 0), (0, 0), (ph, ph), (pw, pw)))
    Hp, Wp = x_pad.shape[2], x_pad.shape[3]
    Ho = (Hp - kh) // sh + 1
    Wo = (Wp - kw) // sw + 1
    cols = []
    for i in range(kh):
        for j in range(kw):
            cols.append(
                x_pad[:, :, i:i + sh * (Ho - 1) + 1:sh, j:j + sw * (Wo - 1) + 1:sw])
    return jnp.stack(cols, axis=2), Ho, Wo


def _slab_kernel(t_ref, p_ref, o_ref):
    """General path.  p_ref: (k, TR, 128) patch slabs -- k OUTERMOST so the
    reduction is a pure per-vreg VPU max/add (no sublane padding, no XLU).
    o_ref: (TR, 128) lane-dense output."""
    T = t_ref[0]
    p = p_ref[...].astype(jnp.float32)
    m = jnp.max(p, axis=0)                               # elementwise across slabs
    keep = p >= (T * m)[None]
    sel = jnp.sum(jnp.where(keep, p, 0.0), axis=0)
    cnt = jnp.sum(keep.astype(jnp.float32), axis=0)
    avg = sel * pl.reciprocal(cnt + 1e-6, approx=False)
    o_ref[...] = jnp.where(cnt > 0.0, avg, m).astype(o_ref.dtype)


def _tmaxavg_general(x, t_arr, kernel_size, stride, padding):
    B, C, H, W = x.shape
    kh, kw = kernel_size
    k = kh * kw
    patches, Ho, Wo = _unfold_patches(x, kernel_size, stride, padding)
    total = B * C * Ho * Wo
    LANE = 128

    rows = pl.cdiv(total, LANE)
    tile = _pick_row_tile(max(rows, 8), k * LANE * x.dtype.itemsize)
    rows_p = pl.cdiv(rows, tile) * tile

    # Slab layout (k, rows, 128): k leads, trailing dims are lane-dense.
    slabs = patches.transpose(2, 0, 1, 3, 4).reshape(k, total)
    slabs = jnp.pad(slabs, ((0, 0), (0, rows_p * LANE - total)))
    slabs = slabs.reshape(k, rows_p, LANE)

    out2 = pl.pallas_call(
        _slab_kernel,
        out_shape=jax.ShapeDtypeStruct((rows_p, LANE), x.dtype),
        grid_spec=pltpu.PrefetchScalarGridSpec(
            num_scalar_prefetch=0,
            grid=(rows_p // tile,),
            in_specs=[
                pl.BlockSpec(memory_space=pltpu.SMEM),
                pl.BlockSpec((k, tile, LANE), lambda i: (0, i, 0)),
            ],
            out_specs=pl.BlockSpec((tile, LANE), lambda i: (i, 0)),
        ),
        compiler_params=pltpu.CompilerParams(
            dimension_semantics=("parallel",),
            vmem_limit_bytes=32 * 1024 * 1024),
    )(t_arr, slabs)

    return out2.reshape(-1)[:total].reshape(B, C, Ho, Wo)


# ----------------------------------------------------------------------- entry point
@functools.partial(jax.jit, static_argnames=("kernel_size", "stride", "padding"))
def tmaxavg_pool2d(x, T, kernel_size=(2, 2), stride=None, padding=(0, 0)):
    """T-Max-Avg pooling. x: (B, C, H, W), T: scalar (learnable threshold)."""
    if isinstance(kernel_size, int):
        kernel_size = (kernel_size, kernel_size)
    if stride is None:
        stride = kernel_size
    elif isinstance(stride, int):
        stride = (stride, stride)
    if isinstance(padding, int):
        padding = (padding, padding)

    B, C, H, W = x.shape
    t_arr = jnp.asarray(T, dtype=jnp.float32).reshape(1)

    if (kernel_size == (2, 2) and stride == (2, 2) and padding == (0, 0)
            and H % 2 == 0 and W % 2 == 0):
        return _tmaxavg_fused_2x2(x, t_arr)            # fused, no unfold in HBM
    return _tmaxavg_general(x, t_arr, kernel_size, stride, padding)


# ------------------------------------------------------------------------- reference
def _reference(x, T, kernel_size, stride, padding):
    """Pure-JAX reference mirroring the PyTorch forward."""
    patches, Ho, Wo = _unfold_patches(x, kernel_size, stride, padding)
    B, C, k, _, _ = patches.shape
    patches = patches.reshape(B, C, k, -1)
    max_val = jnp.max(patches, axis=2, keepdims=True)
    mask = (patches >= T * max_val).astype(jnp.float32)
    selected_sum = jnp.sum(patches * mask, axis=2)
    count = jnp.sum(mask, axis=2)
    avg_val = selected_sum / (count + 1e-6)
    avg_val = jnp.where(count > 0, avg_val, max_val[:, :, 0, :])
    return avg_val.reshape(B, C, Ho, Wo)


if __name__ == "__main__":
    key = jax.random.PRNGKey(0)
    x = jax.random.normal(key, (2, 4, 16, 16), dtype=jnp.float32)
    T_init = jnp.float32(0.9)

    # Module config: kernel_size=2 -> stride=2, padding=0, T=0.9 (fused Pallas path).
    out = tmaxavg_pool2d(x, T_init, kernel_size=(2, 2), stride=(2, 2), padding=(0, 0))
    out = jax.block_until_ready(out)
    ref = _reference(x, T_init, (2, 2), (2, 2), (0, 0))
    assert out.shape == (2, 4, 8, 8)
    assert jnp.allclose(out, ref, atol=1e-5, rtol=1e-5), float(jnp.max(jnp.abs(out - ref)))

    # Overlapping / padded config exercises the general slab-layout Pallas kernel.
    out2 = tmaxavg_pool2d(x, T_init, kernel_size=(3, 3), stride=(2, 2), padding=(1, 1))
    out2 = jax.block_until_ready(out2)
    ref2 = _reference(x, T_init, (3, 3), (2, 2), (1, 1))
    assert out2.shape == (2, 4, 8, 8)
    assert jnp.allclose(out2, ref2, atol=1e-5, rtol=1e-5)

    print("KERNEL_OK")
</pallas_src>

<mosaic_0001>
module attributes {stable_mosaic.version = 11 : i64} {
  func.func @_fused2x2_kernel(%arg0: i32, %arg1: memref<1xf32, #tpu.memory_space<smem>>, %arg2: memref<8x128xf32, #tpu.memory_space<vmem>>, %arg3: memref<8x64xf32, #tpu.memory_space<vmem>>) attributes {dimension_semantics = [#tpu.dimension_semantics<parallel>], iteration_bounds = array<i64: 2>, scalar_prefetch = 0 : i64, scratch_operands = 0 : i64, tpu.core_type = #tpu.core_type<tc>, window_params = [{transform_indices = @transform_0, window_bounds = array<i64: 1>}, {transform_indices = @transform_1, window_bounds = array<i64: 8, 128>}, {transform_indices = @transform_2, window_bounds = array<i64: 8, 64>}]} {
    %c0 = arith.constant 0 : index
    %0 = memref.load %arg1[%c0] : memref<1xf32, #tpu.memory_space<smem>>
    %c0_0 = arith.constant 0 : index
    %c0_1 = arith.constant 0 : index
    %1 = vector.load %arg2[%c0_0, %c0_1] : memref<8x128xf32, #tpu.memory_space<vmem>>, vector<8x128xf32>
    %2 = tpu.iota {dimensions = array<i32: 1>} : vector<8x128xi32>
    %c1_i32 = arith.constant 1 : i32
    %3 = vector.broadcast %c1_i32 : i32 to vector<8x128xi32>
    %4 = arith.andi %2, %3 : vector<8x128xi32>
    %c0_i32 = arith.constant 0 : i32
    %5 = vector.broadcast %c0_i32 : i32 to vector<8x128xi32>
    %6 = arith.cmpi eq, %4, %5 : vector<8x128xi32>
    %7 = vector.extract_strided_slice %1 {offsets = [0, 16], sizes = [8, 16], strides = [1, 1]} : vector<8x128xf32> to vector<8x16xf32>
    %8 = vector.extract_strided_slice %1 {offsets = [0, 0], sizes = [8, 16], strides = [1, 1]} : vector<8x128xf32> to vector<8x16xf32>
    %9 = vector.extract_strided_slice %1 {offsets = [0, 48], sizes = [8, 16], strides = [1, 1]} : vector<8x128xf32> to vector<8x16xf32>
    %10 = vector.extract_strided_slice %1 {offsets = [0, 32], sizes = [8, 16], strides = [1, 1]} : vector<8x128xf32> to vector<8x16xf32>
    %11 = vector.extract_strided_slice %1 {offsets = [0, 80], sizes = [8, 16], strides = [1, 1]} : vector<8x128xf32> to vector<8x16xf32>
    %12 = vector.extract_strided_slice %1 {offsets = [0, 64], sizes = [8, 16], strides = [1, 1]} : vector<8x128xf32> to vector<8x16xf32>
    %13 = vector.extract_strided_slice %1 {offsets = [0, 112], sizes = [8, 16], strides = [1, 1]} : vector<8x128xf32> to vector<8x16xf32>
    %14 = vector.extract_strided_slice %1 {offsets = [0, 96], sizes = [8, 16], strides = [1, 1]} : vector<8x128xf32> to vector<8x16xf32>
    %15 = tpu.concatenate %7, %8, %9, %10, %11, %12, %13, %14 in 1 : vector<8x16xf32>, vector<8x16xf32>, vector<8x16xf32>, vector<8x16xf32>, vector<8x16xf32>, vector<8x16xf32>, vector<8x16xf32>, vector<8x16xf32> -> vector<8x128xf32>
    %16 = arith.maximumf %1, %15 : vector<8x128xf32>
    %17 = vector.extract_strided_slice %16 {offsets = [0, 1], sizes = [8, 127], strides = [1, 1]} : vector<8x128xf32> to vector<8x127xf32>
    %18 = vector.extract_strided_slice %16 {offsets = [0, 0], sizes = [8, 1], strides = [1, 1]} : vector<8x128xf32> to vector<8x1xf32>
    %19 = tpu.concatenate %17, %18 in 1 : vector<8x127xf32>, vector<8x1xf32> -> vector<8x128xf32>
    %20 = vector.extract_strided_slice %16 {offsets = [0, 127], sizes = [8, 1], strides = [1, 1]} : vector<8x128xf32> to vector<8x1xf32>
    %21 = vector.extract_strided_slice %16 {offsets = [0, 0], sizes = [8, 127], strides = [1, 1]} : vector<8x128xf32> to vector<8x127xf32>
    %22 = tpu.concatenate %20, %21 in 1 : vector<8x1xf32>, vector<8x127xf32> -> vector<8x128xf32>
    %23 = arith.select %6, %19, %22 : vector<8x128xi1>, vector<8x128xf32>
    %24 = arith.maximumf %16, %23 : vector<8x128xf32>
    %25 = vector.broadcast %0 : f32 to vector<8x128xf32>
    %26 = arith.mulf %25, %24 : vector<8x128xf32>
    %27 = arith.cmpf oge, %1, %26 : vector<8x128xf32>
    %cst = arith.constant 0.000000e+00 : f32
    %28 = vector.broadcast %cst : f32 to vector<8x128xf32>
    %29 = arith.select %27, %1, %28 : vector<8x128xi1>, vector<8x128xf32>
    %30 = arith.extui %27 : vector<8x128xi1> to vector<8x128xi32>
    %31 = arith.sitofp %30 : vector<8x128xi32> to vector<8x128xf32>
    %32 = vector.extract_strided_slice %29 {offsets = [0, 16], sizes = [8, 16], strides = [1, 1]} : vector<8x128xf32> to vector<8x16xf32>
    %33 = vector.extract_strided_slice %29 {offsets = [0, 0], sizes = [8, 16], strides = [1, 1]} : vector<8x128xf32> to vector<8x16xf32>
    %34 = vector.extract_strided_slice %29 {offsets = [0, 48], sizes = [8, 16], strides = [1, 1]} : vector<8x128xf32> to vector<8x16xf32>
    %35 = vector.extract_strided_slice %29 {offsets = [0, 32], sizes = [8, 16], strides = [1, 1]} : vector<8x128xf32> to vector<8x16xf32>
    %36 = vector.extract_strided_slice %29 {offsets = [0, 80], sizes = [8, 16], strides = [1, 1]} : vector<8x128xf32> to vector<8x16xf32>
    %37 = vector.extract_strided_slice %29 {offsets = [0, 64], sizes = [8, 16], strides = [1, 1]} : vector<8x128xf32> to vector<8x16xf32>
    %38 = vector.extract_strided_slice %29 {offsets = [0, 112], sizes = [8, 16], strides = [1, 1]} : vector<8x128xf32> to vector<8x16xf32>
    %39 = vector.extract_strided_slice %29 {offsets = [0, 96], sizes = [8, 16], strides = [1, 1]} : vector<8x128xf32> to vector<8x16xf32>
    %40 = tpu.concatenate %32, %33, %34, %35, %36, %37, %38, %39 in 1 : vector<8x16xf32>, vector<8x16xf32>, vector<8x16xf32>, vector<8x16xf32>, vector<8x16xf32>, vector<8x16xf32>, vector<8x16xf32>, vector<8x16xf32> -> vector<8x128xf32>
    %41 = arith.addf %29, %40 : vector<8x128xf32>
    %42 = vector.extract_strided_slice %41 {offsets = [0, 1], sizes = [8, 127], strides = [1, 1]} : vector<8x128xf32> to vector<8x127xf32>
    %43 = vector.extract_strided_slice %41 {offsets = [0, 0], sizes = [8, 1], strides = [1, 1]} : vector<8x128xf32> to vector<8x1xf32>
    %44 = tpu.concatenate %42, %43 in 1 : vector<8x127xf32>, vector<8x1xf32> -> vector<8x128xf32>
    %45 = vector.extract_strided_slice %41 {offsets = [0, 127], sizes = [8, 1], strides = [1, 1]} : vector<8x128xf32> to vector<8x1xf32>
    %46 = vector.extract_strided_slice %41 {offsets = [0, 0], sizes = [8, 127], strides = [1, 1]} : vector<8x128xf32> to vector<8x127xf32>
    %47 = tpu.concatenate %45, %46 in 1 : vector<8x1xf32>, vector<8x127xf32> -> vector<8x128xf32>
    %48 = arith.select %6, %44, %47 : vector<8x128xi1>, vector<8x128xf32>
    %49 = arith.addf %41, %48 : vector<8x128xf32>
    %50 = vector.extract_strided_slice %31 {offsets = [0, 16], sizes = [8, 16], strides = [1, 1]} : vector<8x128xf32> to vector<8x16xf32>
    %51 = vector.extract_strided_slice %31 {offsets = [0, 0], sizes = [8, 16], strides = [1, 1]} : vector<8x128xf32> to vector<8x16xf32>
    %52 = vector.extract_strided_slice %31 {offsets = [0, 48], sizes = [8, 16], strides = [1, 1]} : vector<8x128xf32> to vector<8x16xf32>
    %53 = vector.extract_strided_slice %31 {offsets = [0, 32], sizes = [8, 16], strides = [1, 1]} : vector<8x128xf32> to vector<8x16xf32>
    %54 = vector.extract_strided_slice %31 {offsets = [0, 80], sizes = [8, 16], strides = [1, 1]} : vector<8x128xf32> to vector<8x16xf32>
    %55 = vector.extract_strided_slice %31 {offsets = [0, 64], sizes = [8, 16], strides = [1, 1]} : vector<8x128xf32> to vector<8x16xf32>
    %56 = vector.extract_strided_slice %31 {offsets = [0, 112], sizes = [8, 16], strides = [1, 1]} : vector<8x128xf32> to vector<8x16xf32>
    %57 = vector.extract_strided_slice %31 {offsets = [0, 96], sizes = [8, 16], strides = [1, 1]} : vector<8x128xf32> to vector<8x16xf32>
    %58 = tpu.concatenate %50, %51, %52, %53, %54, %55, %56, %57 in 1 : vector<8x16xf32>, vector<8x16xf32>, vector<8x16xf32>, vector<8x16xf32>, vector<8x16xf32>, vector<8x16xf32>, vector<8x16xf32>, vector<8x16xf32> -> vector<8x128xf32>
    %59 = arith.addf %31, %58 : vector<8x128xf32>
    %60 = vector.extract_strided_slice %59 {offsets = [0, 1], sizes = [8, 127], strides = [1, 1]} : vector<8x128xf32> to vector<8x127xf32>
    %61 = vector.extract_strided_slice %59 {offsets = [0, 0], sizes = [8, 1], strides = [1, 1]} : vector<8x128xf32> to vector<8x1xf32>
    %62 = tpu.concatenate %60, %61 in 1 : vector<8x127xf32>, vector<8x1xf32> -> vector<8x128xf32>
    %63 = vector.extract_strided_slice %59 {offsets = [0, 127], sizes = [8, 1], strides = [1, 1]} : vector<8x128xf32> to vector<8x1xf32>
    %64 = vector.extract_strided_slice %59 {offsets = [0, 0], sizes = [8, 127], strides = [1, 1]} : vector<8x128xf32> to vector<8x127xf32>
    %65 = tpu.concatenate %63, %64 in 1 : vector<8x1xf32>, vector<8x127xf32> -> vector<8x128xf32>
    %66 = arith.select %6, %62, %65 : vector<8x128xi1>, vector<8x128xf32>
    %67 = arith.addf %59, %66 : vector<8x128xf32>
    %cst_2 = arith.constant 9.99999997E-7 : f32
    %68 = vector.broadcast %cst_2 : f32 to vector<8x128xf32>
    %69 = arith.addf %67, %68 : vector<8x128xf32>
    %70 = tpu.reciprocal %69 : vector<8x128xf32> -> vector<8x128xf32>
    %cst_3 = arith.constant 0.000000e+00 : f32
    %71 = vector.broadcast %cst_3 : f32 to vector<8x128xf32>
    %72 = arith.cmpf ogt, %67, %71 : vector<8x128xf32>
    %73 = arith.mulf %49, %70 : vector<8x128xf32>
    %74 = arith.select %72, %73, %24 : vector<8x128xi1>, vector<8x128xf32>
    %75 = vector.extract_strided_slice %74 {offsets = [0, 0], sizes = [8, 16], strides = [1, 1]} : vector<8x128xf32> to vector<8x16xf32>
    %76 = vector.extract_strided_slice %74 {offsets = [0, 32], sizes = [8, 16], strides = [1, 1]} : vector<8x128xf32> to vector<8x16xf32>
    %77 = vector.extract_strided_slice %74 {offsets = [0, 64], sizes = [8, 16], strides = [1, 1]} : vector<8x128xf32> to vector<8x16xf32>
    %78 = vector.extract_strided_slice %74 {offsets = [0, 96], sizes = [8, 16], strides = [1, 1]} : vector<8x128xf32> to vector<8x16xf32>
    %79 = tpu.concatenate %75, %76, %77, %78 in 1 : vector<8x16xf32>, vector<8x16xf32>, vector<8x16xf32>, vector<8x16xf32> -> vector<8x64xf32>
    %c0_4 = arith.constant 0 : index
    %c0_5 = arith.constant 0 : index
    %80 = vector.load %arg3[%c0_4, %c0_5] : memref<8x64xf32, #tpu.memory_space<vmem>>, vector<8x64xf32>
    tpu.vector_store %arg3[%c0_4, %c0_5], %79 {strides = array<i32>} : memref<8x64xf32, #tpu.memory_space<vmem>>, vector<8x64xf32>,
    return
  }
  func.func @transform_0(%arg0: i32) -> i32 {
    %c0_i32 = arith.constant 0 : i32
    %c0_i32_0 = arith.constant 0 : i32
    return %c0_i32 : i32
  }
  func.func @transform_1(%arg0: i32) -> (i32, i32) {
    %c0_i32 = arith.constant 0 : i32
    %c0_i32_0 = arith.constant 0 : i32
    return %arg0, %c0_i32 : i32, i32
  }
  func.func @transform_2(%arg0: i32) -> (i32, i32) {
    %c0_i32 = arith.constant 0 : i32
    %c0_i32_0 = arith.constant 0 : i32
    return %arg0, %c0_i32 : i32, i32
  }
}

</mosaic_0001>

<llo_original>
// kernel: tmaxavg_pool2d.1
$region0: #{tmaxavg_pool2d.1}
  #allocation0 [shape = 'u32[]', space=smem, size = 0x4, offset = 0x4, fixed_abs, tag = 'smem constant byte address 0x4 - core index']
  #allocation1 [shape = 'u32[144,128]{1,0:T(1,128)}', space=vmem, size = 0x12000, scoped, tag = 'internal scratch']
  #allocation2 [shape = 'f32[1]{0:T(128)S(6)}', space=smem, size = 0x200, scoped, tag = 'scoped memory for tmaxavg_pool2d.1']
  %s0 = inlined_call_operand.<no memory space> [shape: f32[1], index: 0, kind: input, shape index: {}]
  %s1 = inlined_call_operand.vmem [shape: f32[16,128], index: 1, kind: input, shape index: {}]
  %s2 = inlined_call_operand.vmem [shape: f32[16,64], index: 2, kind: output, shape index: {}]
  %s3 = sld [smem:[#allocation0]]
  $region41: #{tmaxavg_pool2d.1} parent=0
    _
  %s5 = ssub.s32 1, %s3
  %s6 = scalar_select 0, %s5, %s3
  %7 = sst [smem:[#allocation2]] %s0
  loop: start=0, step=1, limit=4
  $region2: #{tmaxavg_pool2d.1} parent=0 // loop_pre_header
    _
  $region3: #{tmaxavg_pool2d.1} parent=0 // loop_header
    %s9 = sphi 0, %s13
    %p10 = scmp.ge.s32.totalorder %s9, 4
    %s17 = sphi 0, %s17
    %s19 = sphi 0, %s17
    %s20 = sphi 0, %s19
    %s34 = sphi 0, %s20
    %s40 = sphi 0, %s42
    %s43 = sphi 0, %s40
    %s44 = sphi 0, %s43
    %s60 = sphi 0, %s44
    %s66 = sphi 0, %s68
    %s69 = sphi 0, %s66
    %s70 = sphi 0, %s69
    %s86 = sphi 0, %s70
  $region4: #{tmaxavg_pool2d.1} parent=0 // loop_header_branch
    %12 = sbr.rel (%p10) target = $region8
  $region5: #{tmaxavg_pool2d.1} parent=0 // loop_body
    %s14 = ssub.s32 %s9, 1
    %s15 = ssub.s32 %s9, 2
    %s16 = sadd.s32 %s9, 1
    %s18 = sadd.s32 %s17, 1
    %p21 = scmp.eq.s32.totalorder %s9, 1
    %p22 = scmp.ne.s32.totalorder %s17, %s19
    %p23 = scmp.eq.s32.totalorder %s9, 0
    %p24 = por %p22, %p23
    %p25 = scmp.ne.s32.totalorder %s17, %s19
    %p26 = scmp.eq.s32.totalorder %s14, 1
    %p27 = por %p25, %p26
    %p28 = scmp.ne.s32.totalorder %s19, %s20
    %p29 = scmp.eq.s32.totalorder %s14, 0
    %p30 = por %p28, %p29
    %p31 = scmp.ne.s32.totalorder %s19, %s20
    %p32 = scmp.eq.s32.totalorder %s15, 1
    %p33 = por %p31, %p32
    %p35 = scmp.ne.s32.totalorder %s20, %s34
    %p36 = scmp.eq.s32.totalorder %s15, 0
    %p37 = por %p35, %p36
    %s38 = ssub.s32 %s9, %s16
    %p39 = scmp.eq.s32.totalorder %s38, 0
    %s41 = sadd.s32 %s40, 1
    %s42 = scalar_select %p39, %s40, %s41
    %p45 = pneg %p39
    %p46 = scmp.eq.s32.totalorder %s9, 1
    %p47 = por %p45, %p46
    %p48 = scmp.ne.s32.totalorder %s40, %s43
    %p49 = scmp.eq.s32.totalorder %s9, 0
    %p50 = por %p48, %p49
    %p51 = scmp.ne.s32.totalorder %s40, %s43
    %p52 = scmp.eq.s32.totalorder %s14, 1
    %p53 = por %p51, %p52
    %p54 = scmp.ne.s32.totalorder %s43, %s44
    %p55 = scmp.eq.s32.totalorder %s14, 0
    %p56 = por %p54, %p55
    %p57 = scmp.ne.s32.totalorder %s43, %s44
    %p58 = scmp.eq.s32.totalorder %s15, 1
    %p59 = por %p57, %p58
    %p61 = scmp.ne.s32.totalorder %s44, %s60
    %p62 = scmp.eq.s32.totalorder %s15, 0
    %p63 = por %p61, %p62
    %s64 = ssub.s32 %s9, %s16
    %p65 = scmp.eq.s32.totalorder %s64, 0
    %s67 = sadd.s32 %s66, 1
    %s68 = scalar_select %p65, %s66, %s67
    %p71 = pneg %p65
    %p72 = scmp.eq.s32.totalorder %s9, 1
    %p73 = por %p71, %p72
    %p74 = scmp.ne.s32.totalorder %s66, %s69
    %p75 = scmp.eq.s32.totalorder %s9, 0
    %p76 = por %p74, %p75
    %p77 = scmp.ne.s32.totalorder %s66, %s69
    %p78 = scmp.eq.s32.totalorder %s14, 1
    %p79 = por %p77, %p78
    %p80 = scmp.ne.s32.totalorder %s69, %s70
    %p81 = scmp.eq.s32.totalorder %s14, 0
    %p82 = por %p80, %p81
    %p83 = scmp.ne.s32.totalorder %s69, %s70
    %p84 = scmp.eq.s32.totalorder %s15, 1
    %p85 = por %p83, %p84
    %p87 = scmp.ne.s32.totalorder %s70, %s86
    %p88 = scmp.eq.s32.totalorder %s15, 0
    %p89 = por %p87, %p88
    %p90 = scmp.le.s32.totalorder 1, %s9
    %p91 = scmp.lt.s32.totalorder %s9, 3
    %p92 = pnand %p90, %p91
    %p93 = pneg %p92
    // Predicated region
    $region9: #{tmaxavg_pool2d.1} parent=5 // pred_check
      _
    $region10: #{tmaxavg_pool2d.1} parent=5 // pred_check_branch
      %95 = sbr.rel (%p92) target = $region12
    $region11: #{tmaxavg_pool2d.1} parent=5 // pred_region
      %s96 = ssub.s32 %s9, 1
      // Predicated region
      $region13: #{tmaxavg_pool2d.1} parent=11 // pred_check
        %p97 = pneg %p30
      $region14: #{tmaxavg_pool2d.1} parent=11 // pred_check_branch
        %99 = sbr.rel (%p97) target = $region16
      $region15: #{tmaxavg_pool2d.1} parent=11 // pred_region
        _
      $region16: #{tmaxavg_pool2d.1} parent=11 // pred_fallthru
        _
    $region12: #{tmaxavg_pool2d.1} parent=5 // pred_fallthru
      _
    %p100 = scmp.lt.s32.totalorder %s9, 2
    // Predicated region
    $region17: #{tmaxavg_pool2d.1} parent=5 // pred_check
      %p101 = pneg %p100
    $region18: #{tmaxavg_pool2d.1} parent=5 // pred_check_branch
      %103 = sbr.rel (%p101) target = $region20
    $region19: #{tmaxavg_pool2d.1} parent=5 // pred_region
      // Predicated region
      $region21: #{tmaxavg_pool2d.1} parent=19 // pred_check
        %p104 = pneg %p50
      $region22: #{tmaxavg_pool2d.1} parent=19 // pred_check_branch
        %106 = sbr.rel (%p104) target = $region24
      $region23: #{tmaxavg_pool2d.1} parent=19 // pred_region
        %p107 = scmp.lt.s32.totalorder %s9, 1
        %s108 = scalar_select %p107, %s9, 1
        %s109 = smul.addr %s108, 8
        %s110 = scalar_lea.vmem %s1, %s109
      $region24: #{tmaxavg_pool2d.1} parent=19 // pred_fallthru
        _
    $region20: #{tmaxavg_pool2d.1} parent=5 // pred_fallthru
      _
    %p111 = scmp.le.s32.totalorder 1, %s9
    %p112 = scmp.lt.s32.totalorder %s9, 3
    %p113 = pnand %p111, %p112
    %p114 = pneg %p113
    // Predicated region
    $region25: #{tmaxavg_pool2d.1} parent=5 // pred_check
      _
    $region26: #{tmaxavg_pool2d.1} parent=5 // pred_check_branch
      %116 = sbr.rel (%p113) target = $region28
    $region27: #{tmaxavg_pool2d.1} parent=5 // pred_region
      %s117 = ssub.s32 %s9, 1
      %p118 = pneg %p30
      %p119 = pneg %p27
      %p120 = scmp.lt.s32.totalorder %s14, 1
      %s121 = scalar_select %p120, %s14, 1
      %s122 = smul.addr %s121, 8
      %s123 = scalar_lea.vmem %s1, %s122
      %p124 = pneg %p56
      %p125 = pneg %p53
      %p126 = pneg %p82
      %p127 = pneg %p79
      %p128 = scmp.lt.s32.totalorder %s14, 1
      %s129 = scalar_select %p128, %s14, 1
      %s130 = smul.addr %s129, 8
      %s131 = scalar_lea.vmem %s2, %s130
      %p132 = scmp.lt.s32.totalorder %s14, 1
      %s133 = scalar_select %p132, %s14, 1
      %s134 = smul.addr %s133, 8
      %s135 = scalar_lea.vmem %s1, %s134
      %p136 = scmp.lt.s32.totalorder %s14, 1
      %s137 = scalar_select %p136, %s14, 1
      %s138 = smul.addr %s137, 8
      %s139 = scalar_lea.vmem %s2, %s138
      %s140 = sld [smem:[#allocation2]]
      %v141 = vld [vmem:[%s135] sm:$0xff]
      %v142 = vlaneseq
      %v143 = vand.u32 %v142, 127
      %v144 = vand.u32 %v143, 1
      %vm145 = vcmp.eq.s32.totalorder %v144, 0
      %147 = vrot.lane.b32.xlu0 %v141, 112
      %v148 = vpop.permute.xlu0 %147
      %150 = vrot.lane.b32.xlu0 %v141, 16
      %v151 = vpop.permute.xlu0 %150
      %vm153 = vcmask 130048
      %v154 = vsel %vm153, %v148, %v151
      %vm155 = vcmask 261120
      %v156 = vsel %vm155, %v154, %v148
      %vm157 = vcmask 392192
      %v158 = vsel %vm157, %v156, %v151
      %vm159 = vcmask 523264
      %v160 = vsel %vm159, %v158, %v148
      %vm161 = vcmask 654336
      %v162 = vsel %vm161, %v160, %v151
      %vm163 = vcmask 785408
      %v164 = vsel %vm163, %v162, %v148
      %vm165 = vcmask 916480
      %v166 = vsel %vm165, %v164, %v151
      %v167 = vmax.f32 %v141, %v166
      %169 = vrot.lane.b32.xlu0 %v167, 127
      %v170 = vpop.permute.xlu0 %169
      %172 = vrot.lane.b32.xlu0 %v167, 1
      %v173 = vpop.permute.xlu0 %172
      %v175 = vsel %vm145, %v170, %v173
      %v176 = vmax.f32 %v167, %v175
      %v177 = vstv %s140
      %v178 = vmul.f32 %v177, %v176
      %vm179 = vcmp.ge.f32.partialorder %v141, %v178
      %v180 = vsel %vm179, %v141, 0.0
      %v181 = vsel %vm179, 1, 0
      %v182 = vcvt.s32.f32 %v181
      %184 = vrot.lane.b32.xlu0 %v180, 112
      %v185 = vpop.permute.xlu0 %184
      %187 = vrot.lane.b32.xlu0 %v180, 16
      %v188 = vpop.permute.xlu0 %187
      %v190 = vsel %vm153, %v185, %v188
      %v191 = vsel %vm155, %v190, %v185
      %v192 = vsel %vm157, %v191, %v188
      %v193 = vsel %vm159, %v192, %v185
      %v194 = vsel %vm161, %v193, %v188
      %v195 = vsel %vm163, %v194, %v185
      %v196 = vsel %vm165, %v195, %v188
      %v197 = vadd.f32 %v180, %v196
      %199 = vrot.lane.b32.xlu0 %v197, 127
      %v200 = vpop.permute.xlu0 %199
      %202 = vrot.lane.b32.xlu0 %v197, 1
      %v203 = vpop.permute.xlu0 %202
      %v205 = vsel %vm145, %v200, %v203
      %v206 = vadd.f32 %v197, %v205
      %208 = vrot.lane.b32.xlu0 %v182, 112
      %v209 = vpop.permute.xlu0 %208
      %211 = vrot.lane.b32.xlu0 %v182, 16
      %v212 = vpop.permute.xlu0 %211
      %v214 = vsel %vm153, %v209, %v212
      %v215 = vsel %vm155, %v214, %v209
      %v216 = vsel %vm157, %v215, %v212
      %v217 = vsel %vm159, %v216, %v209
      %v218 = vsel %vm161, %v217, %v212
      %v219 = vsel %vm163, %v218, %v209
      %v220 = vsel %vm165, %v219, %v212
      %v221 = vadd.f32 %v182, %v220
      %223 = vrot.lane.b32.xlu0 %v221, 127
      %v224 = vpop.permute.xlu0 %223
      %226 = vrot.lane.b32.xlu0 %v221, 1
      %v227 = vpop.permute.xlu0 %226
      %v229 = vsel %vm145, %v224, %v227
      %v230 = vadd.f32 %v221, %v229
      %v231 = vadd.f32 %v230, 1e-06
      %v232 = vrcp.pop %v231
      %vm233 = vcmp.gt.f32.partialorder %v230, 0.0
      %v234 = vmul.f32 %v206, %v232
      %v235 = vsel %vm233, %v234, %v176
      %237 = vrot.lane.b32.xlu0 %v235, 112
      %v238 = vpop.permute.xlu0 %237
      %240 = vrot.lane.b32.xlu0 %v235, 96
      %v241 = vpop.permute.xlu0 %240
      %243 = vrot.lane.b32.xlu0 %v235, 80
      %v244 = vpop.permute.xlu0 %243
      %v246 = vsel %vm153, %v235, %v238
      %v247 = vsel %vm155, %v246, %v241
      %v248 = vsel %vm157, %v247, %v244
      %249 = vst.msk [vmem:[%s139] sm:$0xff] %vm159, %v248
      %p250 = scmp.lt.s32.totalorder %s14, 1
      %s251 = scalar_select %p250, %s14, 1
      %s252 = smul.addr %s251, 8
      %s253 = scalar_lea.vmem %s2, %s252
      // Predicated region
      $region29: #{tmaxavg_pool2d.1} parent=27 // pred_check
        %p254 = pneg %p79
      $region30: #{tmaxavg_pool2d.1} parent=27 // pred_check_branch
        %256 = sbr.rel (%p254) target = $region32
      $region31: #{tmaxavg_pool2d.1} parent=27 // pred_region
        _
      $region32: #{tmaxavg_pool2d.1} parent=27 // pred_fallthru
        _
    $region28: #{tmaxavg_pool2d.1} parent=5 // pred_fallthru
      _
    %p257 = scmp.le.s32.totalorder 2, %s9
    // Predicated region
    $region33: #{tmaxavg_pool2d.1} parent=5 // pred_check
      %p258 = pneg %p257
    $region34: #{tmaxavg_pool2d.1} parent=5 // pred_check_branch
      %260 = sbr.rel (%p258) target = $region36
    $region35: #{tmaxavg_pool2d.1} parent=5 // pred_region
      %s261 = ssub.s32 %s9, 2
      // Predicated region
      $region37: #{tmaxavg_pool2d.1} parent=35 // pred_check
        %p262 = pneg %p85
      $region38: #{tmaxavg_pool2d.1} parent=35 // pred_check_branch
        %264 = sbr.rel (%p262) target = $region40
      $region39: #{tmaxavg_pool2d.1} parent=35 // pred_region
        %p265 = scmp.lt.s32.totalorder %s15, 1
        %s266 = scalar_select %p265, %s15, 1
        %s267 = smul.addr %s266, 8
        %s268 = scalar_lea.vmem %s2, %s267
      $region40: #{tmaxavg_pool2d.1} parent=35 // pred_fallthru
        _
    $region36: #{tmaxavg_pool2d.1} parent=5 // pred_fallthru
      _
  $region6: #{tmaxavg_pool2d.1} parent=0 // loop_footer
    %s13 = sadd.s32 1, %s9
  $region7: #{tmaxavg_pool2d.1} parent=0 // loop_footer_branch
    %8 = sbr.rel target = $region3
  $region8: #{tmaxavg_pool2d.1} parent=0 // loop_exit
    _

</llo_original>
